<compile_context>
chip_gen: v5e
topology: v5e:2x2
jax: 0.10.0
libtpu: 0.0.40
codegen_flags: <defaults>
</compile_context>

<pallas_src>
import functools

import jax
import jax.numpy as jnp
from jax.experimental import pallas as pl
from jax.experimental.pallas import tpu as pltpu


def cb_layer_kernel(x_ref, y_ref, out_ref, *, compute_dtype):
    # x_ref, y_ref : (BT, C, N) VMEM tiles (BT batch elements per grid step)
    # out_ref      : (BT, 2C, N)
    C = x_ref.shape[1]
    cdtype = jnp.dtype(compute_dtype)

    x_in = x_ref[...]                                   # (BT, C, N), native dtype
    y_in = y_ref[...]                                   # (BT, C, N), native dtype
    x_c = x_in if x_in.dtype == cdtype else x_in.astype(cdtype)
    y_c = y_in if y_in.dtype == cdtype else y_in.astype(cdtype)

    # energy[b,i,j] = sum_c y[b,c,i] * x[b,c,j]   (== y^T @ x, transpose folded
    # into the dot_general contraction — no explicit .T / XLU vxpose)
    energy = jnp.einsum("bci,bcj->bij", y_c, x_c,
                        preferred_element_type=jnp.float32)      # (BT, N, N) f32

    # Row softmax, stats in f32.  Only energy/e are ever N^2-sized.
    m = jnp.max(energy, axis=-1, keepdims=True)                  # (BT, N, 1)
    e = jnp.exp(energy - m)                                      # (BT, N, N) f32
    rowsum = jnp.sum(e, axis=-1)                                 # (BT, N)
    rinv_row = pl.reciprocal(rowsum, approx=False)[:, None, :]   # (BT, 1, N) f32

    # MXU operands in the compute dtype (no-op cast when it is already f32).
    eb = e if cdtype == jnp.dtype(jnp.float32) else e.astype(cdtype)

    # Fused y_r matmul + colsum "matvec": append rinv as one extra operand row
    # so a single (C+1, N) @ (N, N) push yields both un-normalized y_r and the
    # attention column sums.
    ys_aug = jnp.concatenate(
        [(y_in * rinv_row).astype(cdtype), rinv_row.astype(cdtype)],
        axis=1)                                                  # (BT, C+1, N)
    yr_aug = jnp.einsum("bck,bkj->bcj", ys_aug, eb,
                        preferred_element_type=jnp.float32)      # (BT, C+1, N) f32
    colsum_row = yr_aug[:, C:, :]                                # (BT, 1, N)
    cinv_row = pl.reciprocal(colsum_row + 1e-9, approx=False)    # (BT, 1, N) f32

    # y_r[b,c,j] = cinv[b,j] * sum_k (y[b,c,k]*rinv[b,k]) * e[b,k,j]   (y @ A)
    y_r = yr_aug[:, :C, :] * cinv_row                            # (BT, C, N) f32

    # x_r[b,c,k] = rinv[b,k] * sum_j (x[b,c,j]*cinv[b,j]) * e[b,k,j]   (x @ A^T)
    xs = (x_in * cinv_row).astype(cdtype)                        # (BT, C, N)
    x_r = jnp.einsum("bcj,bkj->bck", xs, eb,
                     preferred_element_type=jnp.float32) * rinv_row

    # out = cat([x + y_r, y + x_r], dim=1).
    # Two lane-dense, sublane-aligned half stores when C is a sublane multiple
    # for the output dtype; otherwise fall back to the single full-block store.
    out_dtype = out_ref.dtype
    sublane = {1: 32, 2: 16, 4: 8}.get(jnp.dtype(out_dtype).itemsize, 8)
    if C % sublane == 0:
        out_ref[:, :C, :] = (x_in + y_r).astype(out_dtype)
        out_ref[:, C:, :] = (y_in + x_r).astype(out_dtype)
    else:
        out_ref[...] = jnp.concatenate(
            [x_in + y_r, y_in + x_r], axis=1).astype(out_dtype)


def _vmem_estimate(bt, C, N, in_itemsize, c_itemsize):
    """Peak-live VMEM (bytes) for one grid step, incl. double-buffered I/O."""
    f32 = 4
    est = 0
    est += 2 * 2 * bt * C * N * in_itemsize        # x, y inputs, double-buffered
    est += 2 * bt * 2 * C * N * in_itemsize        # output, double-buffered
    est += 2 * bt * N * N * f32                    # energy + e coexisting (f32)
    if c_itemsize != f32:
        est += bt * N * N * c_itemsize             # eb cast copy
    est += 2 * bt * (C + 1) * N * c_itemsize       # ys_aug + xs (compute dtype)
    est += 8 * bt * C * N * f32                    # f32 temps (yr_aug, x_r, y_r, sums)
    est += 8 * bt * N * f32                        # O(N) softmax stats / scales
    return est


def _vmem_budget_bytes():
    # ~51 MiB on v7x (64 MiB physical / TC), ~102 MiB on v5e/v6e (128 MiB).
    try:
        cap = pltpu.get_tpu_info().vmem_capacity_bytes
    except Exception:
        cap = 128 * 2**20
    return int(0.8 * cap)


def cb_layer(x, y, *, bt=None, compute_dtype=None):
    assert x.shape == y.shape, "concat along dim=1 requires matching shapes"
    B, C, N = x.shape
    in_isz = jnp.dtype(x.dtype).itemsize
    cdtype = jnp.dtype(compute_dtype) if compute_dtype is not None else jnp.dtype(x.dtype)
    c_isz = cdtype.itemsize

    vmem_budget = _vmem_budget_bytes()

    if bt is None:
        # Largest divisor of B whose footprint fits ~half the budget, while
        # keeping >= 2 grid steps (when B >= 2) so the "parallel" batch axis
        # can shard across v7x's two TensorCores.
        bt = 1
        for cand in range(1, B + 1):
            if B % cand:
                continue
            if B >= 2 and B // cand < 2:
                continue
            if _vmem_estimate(cand, C, N, in_isz, c_isz) <= vmem_budget // 2:
                bt = cand
    assert B % bt == 0, "bt must divide the batch dimension"

    est = _vmem_estimate(bt, C, N, in_isz, c_isz)
    vmem_limit = int(min(vmem_budget, max(32 * 2**20, 2 * est)))

    kernel = functools.partial(cb_layer_kernel, compute_dtype=cdtype)
    return pl.pallas_call(
        kernel,
        out_shape=jax.ShapeDtypeStruct((B, 2 * C, N), x.dtype),
        grid_spec=pltpu.PrefetchScalarGridSpec(
            num_scalar_prefetch=0,
            grid=(B // bt,),
            in_specs=[
                pl.BlockSpec((bt, C, N), lambda b: (b, 0, 0)),
                pl.BlockSpec((bt, C, N), lambda b: (b, 0, 0)),
            ],
            out_specs=pl.BlockSpec((bt, 2 * C, N), lambda b: (b, 0, 0)),
        ),
        compiler_params=pltpu.CompilerParams(
            dimension_semantics=("parallel",),
            vmem_limit_bytes=vmem_limit,
        ),
    )(x, y)


def cb_layer_ref(x, y):
    # pure-JAX reference mirroring the PyTorch forward
    y_t = jnp.swapaxes(y, 1, 2)                       # (B, N, C)
    energy = jnp.einsum("bnc,bcm->bnm", y_t, x)       # (B, N, N)
    attention = jax.nn.softmax(energy, axis=-1)
    attention = attention / (1e-9 + attention.sum(axis=1, keepdims=True))
    x_r = jnp.einsum("bcn,bmn->bcm", x, attention)    # x @ attention^T
    y_r = jnp.einsum("bcn,bnm->bcm", y, attention)    # y @ attention
    return jnp.concatenate([x + y_r, y + x_r], axis=1)


if __name__ == "__main__":
    key = jax.random.PRNGKey(0)
    kx, ky = jax.random.split(key)
    B, C, N = 4, 8, 16
    x = jax.random.normal(kx, (B, C, N), dtype=jnp.float32)
    y = jax.random.normal(ky, (B, C, N), dtype=jnp.float32)

    out = jax.block_until_ready(cb_layer(x, y))

    ref = cb_layer_ref(x, y)
    assert out.shape == (B, 2 * C, N)
    assert jnp.allclose(out, ref, atol=1e-4, rtol=1e-4), "mismatch vs reference"

    print("KERNEL_OK")
</pallas_src>

<mosaic_0001>
module attributes {stable_mosaic.version = 11 : i64} {
  func.func @cb_layer_kernel(%arg0: i32, %arg1: memref<2x8x16xf32, #tpu.memory_space<vmem>>, %arg2: memref<2x8x16xf32, #tpu.memory_space<vmem>>, %arg3: memref<2x16x16xf32, #tpu.memory_space<vmem>>) attributes {dimension_semantics = [#tpu.dimension_semantics<parallel>], iteration_bounds = array<i64: 2>, scalar_prefetch = 0 : i64, scratch_operands = 0 : i64, tpu.core_type = #tpu.core_type<tc>, window_params = [{transform_indices = @transform_0, window_bounds = array<i64: 2, 8, 16>}, {transform_indices = @transform_1, window_bounds = array<i64: 2, 8, 16>}, {transform_indices = @transform_2, window_bounds = array<i64: 2, 16, 16>}]} {
    %c0 = arith.constant 0 : index
    %c0_0 = arith.constant 0 : index
    %c0_1 = arith.constant 0 : index
    %0 = vector.load %arg1[%c0, %c0_0, %c0_1] : memref<2x8x16xf32, #tpu.memory_space<vmem>>, vector<2x8x16xf32>
    %c0_2 = arith.constant 0 : index
    %c0_3 = arith.constant 0 : index
    %c0_4 = arith.constant 0 : index
    %1 = vector.load %arg2[%c0_2, %c0_3, %c0_4] : memref<2x8x16xf32, #tpu.memory_space<vmem>>, vector<2x8x16xf32>
    "tpu.trace_start"() <{level = 10 : i32, message = "bci,bcj->bij"}> : () -> ()
    %cst = arith.constant dense<0.000000e+00> : vector<2x16x16xf32>
    %2 = tpu.matmul %1, %0, %cst {dimension_numbers = #tpu.dot_dimension_numbers<[1], [1], [2], [2], [0, 0, 0, 2, 1, 2], [0], [0]>} : vector<2x8x16xf32>, vector<2x8x16xf32>, vector<2x16x16xf32> -> vector<2x16x16xf32>
    "tpu.trace_stop"() : () -> ()
    %cst_5 = arith.constant dense<0xFF800000> : vector<2x16xf32>
    %3 = vector.multi_reduction <maximumf>, %2, %cst_5 [2] : vector<2x16x16xf32> to vector<2x16xf32>
    %4 = vector.shape_cast %3 : vector<2x16xf32> to vector<2x16x1xf32>
    %5 = vector.broadcast %4 : vector<2x16x1xf32> to vector<2x16x16xf32>
    %6 = arith.subf %2, %5 : vector<2x16x16xf32>
    %7 = math.exp %6 : vector<2x16x16xf32>
    %cst_6 = arith.constant dense<0.000000e+00> : vector<2x16xf32>
    %8 = vector.multi_reduction <add>, %7, %cst_6 [2] : vector<2x16x16xf32> to vector<2x16xf32>
    %9 = tpu.reciprocal %8 : vector<2x16xf32> -> vector<2x16xf32>
    %10 = vector.shape_cast %9 : vector<2x16xf32> to vector<2x1x16xf32>
    %11 = vector.broadcast %10 : vector<2x1x16xf32> to vector<2x8x16xf32>
    %12 = arith.mulf %1, %11 : vector<2x8x16xf32>
    %13 = tpu.concatenate %12, %10 in 1 : vector<2x8x16xf32>, vector<2x1x16xf32> -> vector<2x9x16xf32>
    "tpu.trace_start"() <{level = 10 : i32, message = "bck,bkj->bcj"}> : () -> ()
    %cst_7 = arith.constant dense<0.000000e+00> : vector<2x9x16xf32>
    %14 = tpu.matmul %13, %7, %cst_7 {dimension_numbers = #tpu.dot_dimension_numbers<[2], [1], [1], [2], [0, 0, 0, 1, 1, 2], [0], [0]>} : vector<2x9x16xf32>, vector<2x16x16xf32>, vector<2x9x16xf32> -> vector<2x9x16xf32>
    "tpu.trace_stop"() : () -> ()
    %15 = vector.extract_strided_slice %14 {offsets = [0, 8, 0], sizes = [2, 1, 16], strides = [1, 1, 1]} : vector<2x9x16xf32> to vector<2x1x16xf32>
    %cst_8 = arith.constant 9.99999971E-10 : f32
    %16 = vector.broadcast %cst_8 : f32 to vector<2x1x16xf32>
    %17 = arith.addf %15, %16 : vector<2x1x16xf32>
    %18 = tpu.reciprocal %17 : vector<2x1x16xf32> -> vector<2x1x16xf32>
    %19 = vector.extract_strided_slice %14 {offsets = [0, 0, 0], sizes = [2, 8, 16], strides = [1, 1, 1]} : vector<2x9x16xf32> to vector<2x8x16xf32>
    %20 = vector.broadcast %18 : vector<2x1x16xf32> to vector<2x8x16xf32>
    %21 = arith.mulf %19, %20 : vector<2x8x16xf32>
    %22 = vector.broadcast %18 : vector<2x1x16xf32> to vector<2x8x16xf32>
    %23 = arith.mulf %0, %22 : vector<2x8x16xf32>
    "tpu.trace_start"() <{level = 10 : i32, message = "bcj,bkj->bck"}> : () -> ()
    %cst_9 = arith.constant dense<0.000000e+00> : vector<2x8x16xf32>
    %24 = tpu.matmul %23, %7, %cst_9 {dimension_numbers = #tpu.dot_dimension_numbers<[2], [2], [1], [1], [0, 0, 0, 1, 1, 1], [0], [0]>} : vector<2x8x16xf32>, vector<2x16x16xf32>, vector<2x8x16xf32> -> vector<2x8x16xf32>
    "tpu.trace_stop"() : () -> ()
    %25 = vector.broadcast %10 : vector<2x1x16xf32> to vector<2x8x16xf32>
    %26 = arith.mulf %24, %25 : vector<2x8x16xf32>
    %27 = arith.addf %0, %21 : vector<2x8x16xf32>
    %c0_10 = arith.constant 0 : index
    %c0_11 = arith.constant 0 : index
    %c0_12 = arith.constant 0 : index
    %28 = vector.load %arg3[%c0_10, %c0_11, %c0_12] : memref<2x16x16xf32, #tpu.memory_space<vmem>>, vector<2x8x16xf32>
    tpu.vector_store %arg3[%c0_10, %c0_11, %c0_12], %27 {strides = array<i32>} : memref<2x16x16xf32, #tpu.memory_space<vmem>>, vector<2x8x16xf32>,
    %29 = arith.addf %1, %26 : vector<2x8x16xf32>
    %c0_13 = arith.constant 0 : index
    %c8 = arith.constant 8 : index
    %c0_14 = arith.constant 0 : index
    %30 = vector.load %arg3[%c0_13, %c8, %c0_14] : memref<2x16x16xf32, #tpu.memory_space<vmem>>, vector<2x8x16xf32>
    tpu.vector_store %arg3[%c0_13, %c8, %c0_14], %29 {strides = array<i32>} : memref<2x16x16xf32, #tpu.memory_space<vmem>>, vector<2x8x16xf32>,
    return
  }
  func.func @transform_0(%arg0: i32) -> (i32, i32, i32) {
    %c0_i32 = arith.constant 0 : i32
    %c0_i32_0 = arith.constant 0 : i32
    %c0_i32_1 = arith.constant 0 : i32
    return %arg0, %c0_i32, %c0_i32_0 : i32, i32, i32
  }
  func.func @transform_1(%arg0: i32) -> (i32, i32, i32) {
    %c0_i32 = arith.constant 0 : i32
    %c0_i32_0 = arith.constant 0 : i32
    %c0_i32_1 = arith.constant 0 : i32
    return %arg0, %c0_i32, %c0_i32_0 : i32, i32, i32
  }
  func.func @transform_2(%arg0: i32) -> (i32, i32, i32) {
    %c0_i32 = arith.constant 0 : i32
    %c0_i32_0 = arith.constant 0 : i32
    %c0_i32_1 = arith.constant 0 : i32
    return %arg0, %c0_i32, %c0_i32_0 : i32, i32, i32
  }
}

</mosaic_0001>

<llo_original>
// kernel: tpu_custom_call.1
$region0: #{tpu_custom_call.1}
  #allocation0 [shape = 'u32[]', space=smem, size = 0x4, offset = 0x4, fixed_abs, tag = 'smem constant byte address 0x4 - core index']
  #allocation1 [shape = 'u32[72,128]{1,0:T(1,128)}', space=vmem, size = 0x9000, scoped, tag = 'internal scratch']
  %s0 = inlined_call_operand.hbm [shape: f32[4,8,16], index: 0, kind: input, shape index: {}]
  %s1 = inlined_call_operand.hbm [shape: f32[4,8,16], index: 1, kind: input, shape index: {}]
  %s2 = inlined_call_operand.hbm [shape: f32[4,16,16], index: 2, kind: output, shape index: {}]
  %s3 = sld [smem:[#allocation0]]
  $region49: #{tpu_custom_call.1} parent=0
    _
  %s5 = ssub.s32 1, %s3
  %s6 = scalar_select 0, %s5, %s3
  $region1: #{tpu_custom_call.1} parent=0
    #allocation2 [shape = 'u8[16384]{0}', space=vmem, size = 0x4000, scoped, tag = 'input window, operand 0']
    #allocation3 [shape = 's32[2]{0}', space=sflag, size = 0x8, scoped, tag = 'scoped memory for tpu_custom_call.1']
    #allocation4 [shape = 's32[2]{0}', space=sflag, size = 0x8, scoped, tag = 'scoped memory for tpu_custom_call.1']
    #allocation5 [shape = 'u8[16384]{0}', space=vmem, size = 0x4000, scoped, tag = 'input window, operand 1']
    #allocation6 [shape = 's32[2]{0}', space=sflag, size = 0x8, scoped, tag = 'scoped memory for tpu_custom_call.1']
    #allocation7 [shape = 'u8[32768]{0}', space=vmem, size = 0x8000, scoped, tag = 'output window, operand 0']
    %7 = vsyncpa [#allocation3], 0
    %s8 = scalar_lea.sflag [#allocation3], 1
    %9 = vsyncpa %s8, 0
    %10 = vsyncpa [#allocation6], 0
    %s11 = scalar_lea.sflag [#allocation6], 1
    %12 = vsyncpa %s11, 0
    %13 = vsyncpa [#allocation4], 0
    %s14 = scalar_lea.sflag [#allocation4], 1
    %15 = vsyncpa %s14, 0
    loop: start=0, step=1, limit=4
    $region2: #{tpu_custom_call.1} parent=1 // loop_pre_header
      _
    $region3: #{tpu_custom_call.1} parent=1 // loop_header
      %s17 = sphi 0, %s21
      %p18 = scmp.ge.s32.totalorder %s17, 4
      %s27 = sphi 0, %s29
      %s30 = sphi 0, %s27
      %s31 = sphi 0, %s30
      %s47 = sphi 0, %s31
      %s53 = sphi 0, %s55
      %s56 = sphi 0, %s53
      %s57 = sphi 0, %s56
      %s73 = sphi 0, %s57
      %s79 = sphi 0, %s81
      %s82 = sphi 0, %s79
      %s83 = sphi 0, %s82
      %s99 = sphi 0, %s83
    $region4: #{tpu_custom_call.1} parent=1 // loop_header_branch
      %20 = sbr.rel (%p18) target = $region8
    $region5: #{tpu_custom_call.1} parent=1 // loop_body
      %s22 = ssub.s32 %s17, 1
      %s23 = ssub.s32 %s17, 2
      %s24 = sadd.s32 %s17, 1
      %s25 = ssub.s32 %s17, %s24
      %p26 = scmp.eq.s32.totalorder %s25, 0
      %s28 = sadd.s32 %s27, 1
      %s29 = scalar_select %p26, %s27, %s28
      %p32 = pneg %p26
      %p33 = scmp.eq.s32.totalorder %s17, 1
      %p34 = por %p32, %p33
      %p35 = scmp.ne.s32.totalorder %s27, %s30
      %p36 = scmp.eq.s32.totalorder %s17, 0
      %p37 = por %p35, %p36
      %p38 = scmp.ne.s32.totalorder %s27, %s30
      %p39 = scmp.eq.s32.totalorder %s22, 1
      %p40 = por %p38, %p39
      %p41 = scmp.ne.s32.totalorder %s30, %s31
      %p42 = scmp.eq.s32.totalorder %s22, 0
      %p43 = por %p41, %p42
      %p44 = scmp.ne.s32.totalorder %s30, %s31
      %p45 = scmp.eq.s32.totalorder %s23, 1
      %p46 = por %p44, %p45
      %p48 = scmp.ne.s32.totalorder %s31, %s47
      %p49 = scmp.eq.s32.totalorder %s23, 0
      %p50 = por %p48, %p49
      %s51 = ssub.s32 %s17, %s24
      %p52 = scmp.eq.s32.totalorder %s51, 0
      %s54 = sadd.s32 %s53, 1
      %s55 = scalar_select %p52, %s53, %s54
      %p58 = pneg %p52
      %p59 = scmp.eq.s32.totalorder %s17, 1
      %p60 = por %p58, %p59
      %p61 = scmp.ne.s32.totalorder %s53, %s56
      %p62 = scmp.eq.s32.totalorder %s17, 0
      %p63 = por %p61, %p62
      %p64 = scmp.ne.s32.totalorder %s53, %s56
      %p65 = scmp.eq.s32.totalorder %s22, 1
      %p66 = por %p64, %p65
      %p67 = scmp.ne.s32.totalorder %s56, %s57
      %p68 = scmp.eq.s32.totalorder %s22, 0
      %p69 = por %p67, %p68
      %p70 = scmp.ne.s32.totalorder %s56, %s57
      %p71 = scmp.eq.s32.totalorder %s23, 1
      %p72 = por %p70, %p71
      %p74 = scmp.ne.s32.totalorder %s57, %s73
      %p75 = scmp.eq.s32.totalorder %s23, 0
      %p76 = por %p74, %p75
      %s77 = ssub.s32 %s17, %s24
      %p78 = scmp.eq.s32.totalorder %s77, 0
      %s80 = sadd.s32 %s79, 1
      %s81 = scalar_select %p78, %s79, %s80
      %p84 = pneg %p78
      %p85 = scmp.eq.s32.totalorder %s17, 1
      %p86 = por %p84, %p85
      %p87 = scmp.ne.s32.totalorder %s79, %s82
      %p88 = scmp.eq.s32.totalorder %s17, 0
      %p89 = por %p87, %p88
      %p90 = scmp.ne.s32.totalorder %s79, %s82
      %p91 = scmp.eq.s32.totalorder %s22, 1
      %p92 = por %p90, %p91
      %p93 = scmp.ne.s32.totalorder %s82, %s83
      %p94 = scmp.eq.s32.totalorder %s22, 0
      %p95 = por %p93, %p94
      %p96 = scmp.ne.s32.totalorder %s82, %s83
      %p97 = scmp.eq.s32.totalorder %s23, 1
      %p98 = por %p96, %p97
      %p100 = scmp.ne.s32.totalorder %s83, %s99
      %p101 = scmp.eq.s32.totalorder %s23, 0
      %p102 = por %p100, %p101
      %p103 = scmp.le.s32.totalorder 1, %s17
      %p104 = scmp.lt.s32.totalorder %s17, 3
      %p105 = pnand %p103, %p104
      %p106 = pneg %p105
      // Predicated region
      $region9: #{tpu_custom_call.1} parent=5 // pred_check
        _
      $region10: #{tpu_custom_call.1} parent=5 // pred_check_branch
        %108 = sbr.rel (%p105) target = $region12
      $region11: #{tpu_custom_call.1} parent=5 // pred_region
        %s109 = ssub.s32 %s17, 1
      $region12: #{tpu_custom_call.1} parent=5 // pred_fallthru
        _
      %p110 = scmp.lt.s32.totalorder %s17, 2
      // Predicated region
      $region13: #{tpu_custom_call.1} parent=5 // pred_check
        %p111 = pneg %p110
      $region14: #{tpu_custom_call.1} parent=5 // pred_check_branch
        %113 = sbr.rel (%p111) target = $region16
      $region15: #{tpu_custom_call.1} parent=5 // pred_region
        // Predicated region
        $region17: #{tpu_custom_call.1} parent=15 // pred_check
          %p114 = pneg %p37
        $region18: #{tpu_custom_call.1} parent=15 // pred_check_branch
          %116 = sbr.rel (%p114) target = $region20
        $region19: #{tpu_custom_call.1} parent=15 // pred_region
          %s117 = sand.u32 %s27, 1
          %s118 = scalar_lea.sflag [#allocation3], %s117
          %s119 = sand.u32 %s27, 1
          %s120 = smul.addr %s119, 16
          %s121 = scalar_lea.vmem [#allocation2], %s120
          %s122 = smul.u32 2, %s17
          %124 = vsyncadd %s118, 0
          %s125 = smul.addr %s122, 8
          %s126 = scalar_lea.hbm %s0, %s125
          %s127 = sshll.u32 %s126, 4
          %s128 = int_to_ptr.hbm [resolvable:$true] %s127
          %s129 = sshll.u32 %s121, 4
          %s130 = int_to_ptr.vmem [resolvable:$true] %s129
          %135 = dma.hbm_to_vmem [thread:$0]  %s128, 256, %s130, %s118, 128, 128, 8
        $region20: #{tpu_custom_call.1} parent=15 // pred_fallthru
          _
        // Predicated region
        $region21: #{tpu_custom_call.1} parent=15 // pred_check
          %p136 = pneg %p63
        $region22: #{tpu_custom_call.1} parent=15 // pred_check_branch
          %138 = sbr.rel (%p136) target = $region24
        $region23: #{tpu_custom_call.1} parent=15 // pred_region
          %s139 = sand.u32 %s53, 1
          %s140 = scalar_lea.sflag [#allocation6], %s139
          %s141 = sand.u32 %s53, 1
          %s142 = smul.addr %s141, 16
          %s143 = scalar_lea.vmem [#allocation5], %s142
          %s144 = smul.u32 2, %s17
          %146 = vsyncadd %s140, 0
          %s147 = smul.addr %s144, 8
          %s148 = scalar_lea.hbm %s1, %s147
          %s149 = sshll.u32 %s148, 4
          %s150 = int_to_ptr.hbm [resolvable:$true] %s149
          %s151 = sshll.u32 %s143, 4
          %s152 = int_to_ptr.vmem [resolvable:$true] %s151
          %157 = dma.hbm_to_vmem [thread:$0]  %s150, 256, %s152, %s140, 128, 128, 8
        $region24: #{tpu_custom_call.1} parent=15 // pred_fallthru
          _
      $region16: #{tpu_custom_call.1} parent=5 // pred_fallthru
        _
      %p158 = scmp.le.s32.totalorder 1, %s17
      %p159 = scmp.lt.s32.totalorder %s17, 3
      %p160 = pnand %p158, %p159
      %p161 = pneg %p160
      // Predicated region
      $region25: #{tpu_custom_call.1} parent=5 // pred_check
        _
      $region26: #{tpu_custom_call.1} parent=5 // pred_check_branch
        %163 = sbr.rel (%p160) target = $region28
      $region27: #{tpu_custom_call.1} parent=5 // pred_region
        %s164 = ssub.s32 %s17, 1
        %s165 = sand.u32 %s30, 1
        %s166 = scalar_lea.sflag [#allocation3], %s165
        %s167 = sand.u32 %s30, 1
        %s168 = smul.addr %s167, 16
        %s169 = scalar_lea.vmem [#allocation2], %s168
        // Predicated region
        $region29: #{tpu_custom_call.1} parent=27 // pred_check
          %p170 = pneg %p43
        $region30: #{tpu_custom_call.1} parent=27 // pred_check_branch
          %172 = sbr.rel (%p170) target = $region32
        $region31: #{tpu_custom_call.1} parent=27 // pred_region
          %174 = dma.done %s166, 256
        $region32: #{tpu_custom_call.1} parent=27 // pred_fallthru
          _
        %s175 = sand.u32 %s56, 1
        %s176 = scalar_lea.sflag [#allocation6], %s175
        %s177 = sand.u32 %s56, 1
        %s178 = smul.addr %s177, 16
        %s179 = scalar_lea.vmem [#allocation5], %s178
        // Predicated region
        $region33: #{tpu_custom_call.1} parent=27 // pred_check
          %p180 = pneg %p69
        $region34: #{tpu_custom_call.1} parent=27 // pred_check_branch
          %182 = sbr.rel (%p180) target = $region36
        $region35: #{tpu_custom_call.1} parent=27 // pred_region
          %184 = dma.done %s176, 256
        $region36: #{tpu_custom_call.1} parent=27 // pred_fallthru
          _
        %s185 = sand.u32 %s30, 1
        %s186 = scalar_lea.sflag [#allocation3], %s185
        %s187 = sand.u32 %s30, 1
        %s188 = smul.addr %s187, 16
        %s189 = scalar_lea.vmem [#allocation2], %s188
        %p190 = pneg %p43
        %p191 = pneg %p40
        %s192 = sand.u32 %s56, 1
        %s193 = scalar_lea.sflag [#allocation6], %s192
        %s194 = sand.u32 %s56, 1
        %s195 = smul.addr %s194, 16
        %s196 = scalar_lea.vmem [#allocation5], %s195
        %p197 = pneg %p69
        %p198 = pneg %p66
        %p199 = pneg %p95
        %p200 = pneg %p92
        %s201 = sand.u32 %s82, 1
        %s202 = scalar_lea.sflag [#allocation4], %s201
        %s203 = sand.u32 %s82, 1
        %s204 = smul.addr %s203, 32
        %s205 = scalar_lea.vmem [#allocation7], %s204
        %s206 = smul.u32 2, %s22
        %s207 = smul.u32 2, %s22
        %s208 = smul.u32 2, %s22
        %v209 = vld [vmem:[%s169] sm:$0xff]
        %v210 = vld [vmem:[%s169 + $0x8] sm:$0xff]
        %v211 = vld [vmem:[%s179] sm:$0xff]
        %v212 = vld [vmem:[%s179 + $0x8] sm:$0xff]
        %213 = vxpose.xlu0.b32.start [1/16] %v211, 128
        %214 = vxpose.xlu0.b32.cont [2/16] 0.0, 128
        %215 = vxpose.xlu0.b32.cont [3/16] 0.0, 128
        %216 = vxpose.xlu0.b32.cont [4/16] 0.0, 128
        %217 = vxpose.xlu0.b32.cont [5/16] 0.0, 128
        %218 = vxpose.xlu0.b32.cont [6/16] 0.0, 128
        %219 = vxpose.xlu0.b32.cont [7/16] 0.0, 128
        %220 = vxpose.xlu0.b32.cont [8/16] 0.0, 128
        %221 = vxpose.xlu0.b32.cont [9/16] 0.0, 128
        %222 = vxpose.xlu0.b32.cont [10/16] 0.0, 128
        %223 = vxpose.xlu0.b32.cont [11/16] 0.0, 128
        %224 = vxpose.xlu0.b32.cont [12/16] 0.0, 128
        %225 = vxpose.xlu0.b32.cont [13/16] 0.0, 128
        %226 = vxpose.xlu0.b32.cont [14/16] 0.0, 128
        %227 = vxpose.xlu0.b32.cont [15/16] 0.0, 128
        %228 = vxpose.xlu0.b32.end [16/16] 0.0, 128
        %v229 = vpop.trf.xlu0
        %v230 = vpop.trf.xlu0
        %v231 = vpop.trf.xlu0
        %v232 = vpop.trf.xlu0
        %v233 = vpop.trf.xlu0
        %v234 = vpop.trf.xlu0
        %v235 = vpop.trf.xlu0
        %v236 = vpop.trf.xlu0
        %v237 = vpop.trf.xlu0
        %v238 = vpop.trf.xlu0
        %v239 = vpop.trf.xlu0
        %v240 = vpop.trf.xlu0
        %v241 = vpop.trf.xlu0
        %v242 = vpop.trf.xlu0
        %v243 = vpop.trf.xlu0
        %v244 = vpop.trf.xlu0
        %vm245 = vcmask 64512
        %v247 = vsel %vm245, %v229, 0
        %v250 = vsel %vm245, %v230, 0
        %252 = vmatpush.msra.mxu0 0.0
        %253 = vmatpush.msra.mxu0 0.0
        %254 = vmatpush.msra.mxu0 0.0
        %255 = vmatpush.msra.mxu0 0.0
        %256 = vmatpush.msra.mxu0 0.0
        %257 = vmatpush.msra.mxu0 0.0
        %258 = vmatpush.msra.mxu0 0.0
        %259 = vmatpush.msra.mxu0 0.0
        %260 = vmatpush.msra.mxu0 0.0
        %261 = vmatpush.msra.mxu0 0.0
        %262 = vmatpush.msra.mxu0 0.0
        %263 = vmatpush.msra.mxu0 0.0
        %264 = vmatpush.msra.mxu0 0.0
        %265 = vmatpush.msra.mxu0 0.0
        %266 = vmatpush.msra.mxu0 0.0
        %267 = vmatpush.msra.mxu0 %v209
        %268 = vmatmul.f32.gmra.mxu0 %v247
        %v269 = vpop.f32.mrf.mxu0
        %v270 = vadd.f32 0.0, %v269
        %271 = vmatmul.f32.gmra.mxu0 %v250
        %v272 = vpop.f32.mrf.mxu0
        %v273 = vadd.f32 0.0, %v272
        %274 = vdwg.mxu0
        %275 = vxpose.xlu0.b32.start [1/16] %v212, 128
        %276 = vxpose.xlu0.b32.cont [2/16] 0.0, 128
        %277 = vxpose.xlu0.b32.cont [3/16] 0.0, 128
        %278 = vxpose.xlu0.b32.cont [4/16] 0.0, 128
        %279 = vxpose.xlu0.b32.cont [5/16] 0.0, 128
        %280 = vxpose.xlu0.b32.cont [6/16] 0.0, 128
        %281 = vxpose.xlu0.b32.cont [7/16] 0.0, 128
        %282 = vxpose.xlu0.b32.cont [8/16] 0.0, 128
        %283 = vxpose.xlu0.b32.cont [9/16] 0.0, 128
        %284 = vxpose.xlu0.b32.cont [10/16] 0.0, 128
        %285 = vxpose.xlu0.b32.cont [11/16] 0.0, 128
        %286 = vxpose.xlu0.b32.cont [12/16] 0.0, 128
        %287 = vxpose.xlu0.b32.cont [13/16] 0.0, 128
        %288 = vxpose.xlu0.b32.cont [14/16] 0.0, 128
        %289 = vxpose.xlu0.b32.cont [15/16] 0.0, 128
        %290 = vxpose.xlu0.b32.end [16/16] 0.0, 128
        %v291 = vpop.trf.xlu0
        %v292 = vpop.trf.xlu0
        %v293 = vpop.trf.xlu0
        %v294 = vpop.trf.xlu0
        %v295 = vpop.trf.xlu0
        %v296 = vpop.trf.xlu0
        %v297 = vpop.trf.xlu0
        %v298 = vpop.trf.xlu0
        %v299 = vpop.trf.xlu0
        %v300 = vpop.trf.xlu0
        %v301 = vpop.trf.xlu0
        %v302 = vpop.trf.xlu0
        %v303 = vpop.trf.xlu0
        %v304 = vpop.trf.xlu0
        %v305 = vpop.trf.xlu0
        %v306 = vpop.trf.xlu0
        %v308 = vsel %vm245, %v291, 0
        %v311 = vsel %vm245, %v292, 0
        %313 = vmatpush.msra.mxu0 0.0
        %314 = vmatpush.msra.mxu0 0.0
        %315 = vmatpush.msra.mxu0 0.0
        %316 = vmatpush.msra.mxu0 0.0
        %317 = vmatpush.msra.mxu0 0.0
        %318 = vmatpush.msra.mxu0 0.0
        %319 = vmatpush.msra.mxu0 0.0
        %320 = vmatpush.msra.mxu0 0.0
        %321 = vmatpush.msra.mxu0 0.0
        %322 = vmatpush.msra.mxu0 0.0
        %323 = vmatpush.msra.mxu0 0.0
        %324 = vmatpush.msra.mxu0 0.0
        %325 = vmatpush.msra.mxu0 0.0
        %326 = vmatpush.msra.mxu0 0.0
        %327 = vmatpush.msra.mxu0 0.0
        %328 = vmatpush.msra.mxu0 %v210
        %329 = vmatmul.f32.gmra.mxu0 %v308
        %v330 = vpop.f32.mrf.mxu0
        %v331 = vadd.f32 0.0, %v330
        %332 = vmatmul.f32.gmra.mxu0 %v311
        %v333 = vpop.f32.mrf.mxu0
        %v334 = vadd.f32 0.0, %v333
        %335 = vdwg.mxu0
        %vm336 = vcmask 130048
        %v337 = vsel %vm336, %v270, -inf
        %338 = vmax.xlane.f32.xlu0 %v337
        %v339 = vpop.xlane.xlu0 %338
        %v340 = vsel %vm336, %v273, -inf
        %341 = vmax.xlane.f32.xlu0 %v340
        %v342 = vpop.xlane.xlu0 %341
        %v343 = vsel %vm336, %v331, -inf
        %344 = vmax.xlane.f32.xlu0 %v343
        %v345 = vpop.xlane.xlu0 %344
        %v346 = vsel %vm336, %v334, -inf
        %347 = vmax.xlane.f32.xlu0 %v346
        %v348 = vpop.xlane.xlu0 %347
        %v349 = vsub.f32 %v270, %v339
        %v350 = vsub.f32 %v273, %v342
        %v351 = vsub.f32 %v331, %v345
        %v352 = vsub.f32 %v334, %v348
        %v353 = vmul.f32 %v349, 1.442695
        %v354 = vpow.pop %v353
        %v355 = vmul.f32 %v350, 1.442695
        %v356 = vpow.pop %v355
        %v357 = vmul.f32 %v351, 1.442695
        %v358 = vpow.pop %v357
        %v359 = vmul.f32 %v352, 1.442695
        %v360 = vpow.pop %v359
        %v361 = vsel %vm336, %v354, 0.0
        %362 = vadd.xlane.f32.xlu0 %v361
        %v363 = vpop.xlane.xlu0 %362
        %v364 = vsel %vm336, %v356, 0.0
        %365 = vadd.xlane.f32.xlu0 %v364
        %v366 = vpop.xlane.xlu0 %365
        %v367 = vsel %vm336, %v358, 0.0
        %368 = vadd.xlane.f32.xlu0 %v367
        %v369 = vpop.xlane.xlu0 %368
        %v370 = vsel %vm336, %v360, 0.0
        %371 = vadd.xlane.f32.xlu0 %v370
        %v372 = vpop.xlane.xlu0 %371
        %v373 = vrcp.pop %v363
        %v374 = vmul.f32 %v363, %v373
        %v375 = vsub.f32 1.0, %v374
        %v376 = vmul.f32 %v373, %v375
        %v377 = vadd.f32 %v373, %v376
        %vm378 = vweird.f32 %v363
        %vm379 = vweird.f32 %v373
        %vm380 = vmor %vm378, %vm379
        %v381 = vsel %vm380, %v373, %v377
        %v382 = vand.u32 2147483647, %v363
        %vm383 = vcmp.eq.f32.partialorder %v382, 8.507059e+37
        %v384 = vand.u32 %v363, 2147483648
        %v385 = vor.u32 1.1754944e-38, %v384
        %v386 = vsel %vm383, %v385, %v381
        %v387 = vrcp.pop %v366
        %v388 = vmul.f32 %v366, %v387
        %v389 = vsub.f32 1.0, %v388
        %v390 = vmul.f32 %v387, %v389
        %v391 = vadd.f32 %v387, %v390
        %vm392 = vweird.f32 %v366
        %vm393 = vweird.f32 %v387
        %vm394 = vmor %vm392, %vm393
        %v395 = vsel %vm394, %v387, %v391
        %v396 = vand.u32 2147483647, %v366
        %vm397 = vcmp.eq.f32.partialorder %v396, 8.507059e+37
        %v398 = vand.u32 %v366, 2147483648
        %v399 = vor.u32 1.1754944e-38, %v398
        %v400 = vsel %vm397, %v399, %v395
        %v401 = vrcp.pop %v369
        %v402 = vmul.f32 %v369, %v401
        %v403 = vsub.f32 1.0, %v402
        %v404 = vmul.f32 %v401, %v403
        %v405 = vadd.f32 %v401, %v404
        %vm406 = vweird.f32 %v369
        %vm407 = vweird.f32 %v401
        %vm408 = vmor %vm406, %vm407
        %v409 = vsel %vm408, %v401, %v405
        %v410 = vand.u32 2147483647, %v369
        %vm411 = vcmp.eq.f32.partialorder %v410, 8.507059e+37
        %v412 = vand.u32 %v369, 2147483648
        %v413 = vor.u32 1.1754944e-38, %v412
        %v414 = vsel %vm411, %v413, %v409
        %v415 = vrcp.pop %v372
        %v416 = vmul.f32 %v372, %v415
        %v417 = vsub.f32 1.0, %v416
        %v418 = vmul.f32 %v415, %v417
        %v419 = vadd.f32 %v415, %v418
        %vm420 = vweird.f32 %v372
        %vm421 = vweird.f32 %v415
        %vm422 = vmor %vm420, %vm421
        %v423 = vsel %vm422, %v415, %v419
        %v424 = vand.u32 2147483647, %v372
        %vm425 = vcmp.eq.f32.partialorder %v424, 8.507059e+37
        %v426 = vand.u32 %v372, 2147483648
        %v427 = vor.u32 1.1754944e-38, %v426
        %v428 = vsel %vm425, %v427, %v423
        %v433 = vlaneseq
        %v434 = vand.u32 %v433, 127
        %v435 = vperm.slane %v386, %v434
        %v436 = vadd.s32 %v434, 4294967288
        %v437 = vperm.slane %v400, %v436
        %vm438 = vcmask 130112
        %v439 = vsel %vm438, %v437, %v435
        %v440 = vperm.slane %v414, %v434
        %v441 = vperm.slane %v428, %v436
        %v442 = vsel %vm438, %v441, %v440
        %vm443 = vcmask 1042434
        %v444 = vsel %vm443, %v439, %v439
        %vm445 = vcmask 1043459
        %v446 = vsel %vm445, %v439, %v444
        %vm447 = vcmask 1044484
        %v448 = vsel %vm447, %v439, %v446
        %vm449 = vcmask 1045509
        %v450 = vsel %vm449, %v439, %v448
        %vm451 = vcmask 1046534
        %v452 = vsel %vm451, %v439, %v450
        %vm453 = vcmask 1047559
        %v454 = vsel %vm453, %v439, %v452
        %v455 = vsel %vm443, %v442, %v442
        %v456 = vsel %vm445, %v442, %v455
        %v457 = vsel %vm447, %v442, %v456
        %v458 = vsel %vm449, %v442, %v457
        %v459 = vsel %vm451, %v442, %v458
        %v460 = vsel %vm453, %v442, %v459
        %v463 = vmul.f32 %v211, %v454
        %v464 = vmul.f32 %v212, %v460
        %v466 = vsel %vm336, %v463, 0
        %v468 = vsel %vm336, %v439, 0
        %470 = vmatpush.msra.mxu0 0.0
        %471 = vmatpush.msra.mxu0 0.0
        %472 = vmatpush.msra.mxu0 0.0
        %473 = vmatpush.msra.mxu0 0.0
        %474 = vmatpush.msra.mxu0 0.0
        %475 = vmatpush.msra.mxu0 0.0
        %476 = vmatpush.msra.mxu0 0.0
        %477 = vmatpush.msra.mxu0 0.0
        %478 = vmatpush.msra.mxu0 0.0
        %479 = vmatpush.msra.mxu0 0.0
        %480 = vmatpush.msra.mxu0 0.0
        %481 = vmatpush.msra.mxu0 0.0
        %482 = vmatpush.msra.mxu0 0.0
        %483 = vmatpush.msra.mxu0 0.0
        %484 = vmatpush.msra.mxu0 %v356
        %485 = vmatpush.msra.mxu0 %v354
        %486 = vmatmul.f32.gmra.mxu0 %v466
        %v487 = vpop.f32.mrf.mxu0
        %v488 = vadd.f32 0.0, %v487
        %489 = vmatmul.f32.gmra.mxu0 %v468
        %v490 = vpop.f32.mrf.mxu0
        %v491 = vadd.f32 0.0, %v490
        %492 = vdwg.mxu0
        %v494 = vsel %vm336, %v464, 0
        %v496 = vsel %vm336, %v442, 0
        %498 = vmatpush.msra.mxu0 0.0
        %499 = vmatpush.msra.mxu0 0.0
        %500 = vmatpush.msra.mxu0 0.0
        %501 = vmatpush.msra.mxu0 0.0
        %502 = vmatpush.msra.mxu0 0.0
        %503 = vmatpush.msra.mxu0 0.0
        %504 = vmatpush.msra.mxu0 0.0
        %505 = vmatpush.msra.mxu0 0.0
        %506 = vmatpush.msra.mxu0 0.0
        %507 = vmatpush.msra.mxu0 0.0
        %508 = vmatpush.msra.mxu0 0.0
        %509 = vmatpush.msra.mxu0 0.0
        %510 = vmatpush.msra.mxu0 0.0
        %511 = vmatpush.msra.mxu0 0.0
        %512 = vmatpush.msra.mxu0 %v360
        %513 = vmatpush.msra.mxu0 %v358
        %514 = vmatmul.f32.gmra.mxu0 %v494
        %v515 = vpop.f32.mrf.mxu0
        %v516 = vadd.f32 0.0, %v515
        %517 = vmatmul.f32.gmra.mxu0 %v496
        %v518 = vpop.f32.mrf.mxu0
        %v519 = vadd.f32 0.0, %v518
        %520 = vdwg.mxu0
        %v521 = vadd.f32 %v491, 1e-09
        %v522 = vadd.f32 %v519, 1e-09
        %v523 = vrcp.pop %v521
        %v524 = vmul.f32 %v521, %v523
        %v525 = vsub.f32 1.0, %v524
        %v526 = vmul.f32 %v523, %v525
        %v527 = vadd.f32 %v523, %v526
        %vm528 = vweird.f32 %v521
        %vm529 = vweird.f32 %v523
        %vm530 = vmor %vm528, %vm529
        %v531 = vsel %vm530, %v523, %v527
        %v532 = vand.u32 2147483647, %v521
        %vm533 = vcmp.eq.f32.partialorder %v532, 8.507059e+37
        %v534 = vand.u32 %v521, 2147483648
        %v535 = vor.u32 1.1754944e-38, %v534
        %v536 = vsel %vm533, %v535, %v531
        %v537 = vrcp.pop %v522
        %v538 = vmul.f32 %v522, %v537
        %v539 = vsub.f32 1.0, %v538
        %v540 = vmul.f32 %v537, %v539
        %v541 = vadd.f32 %v537, %v540
        %vm542 = vweird.f32 %v522
        %vm543 = vweird.f32 %v537
        %vm544 = vmor %vm542, %vm543
        %v545 = vsel %vm544, %v537, %v541
        %v546 = vand.u32 2147483647, %v522
        %vm547 = vcmp.eq.f32.partialorder %v546, 8.507059e+37
        %v548 = vand.u32 %v522, 2147483648
        %v549 = vor.u32 1.1754944e-38, %v548
        %v550 = vsel %vm547, %v549, %v545
        %v551 = vperm.slane %v536, 0
        %v552 = vperm.slane %v550, 0
        %v553 = vmul.f32 %v488, %v551
        %v554 = vmul.f32 %v516, %v552
        %v555 = vmul.f32 %v209, %v551
        %v556 = vmul.f32 %v210, %v552
        %v558 = vsel %vm336, %v555, 0
        %v561 = vsel %vm336, %v354, 0
        %v564 = vsel %vm336, %v356, 0
        %566 = vmatpush.xpose.msra.mxu0 0.0
        %567 = vmatpush.xpose.msra.mxu0 0.0
        %568 = vmatpush.xpose.msra.mxu0 0.0
        %569 = vmatpush.xpose.msra.mxu0 0.0
        %570 = vmatpush.xpose.msra.mxu0 0.0
        %571 = vmatpush.xpose.msra.mxu0 0.0
        %572 = vmatpush.xpose.msra.mxu0 0.0
        %573 = vmatpush.xpose.msra.mxu0 0.0
        %574 = vmatpush.xpose.msra.mxu0 0.0
        %575 = vmatpush.xpose.msra.mxu0 0.0
        %576 = vmatpush.xpose.msra.mxu0 0.0
        %577 = vmatpush.xpose.msra.mxu0 0.0
        %578 = vmatpush.xpose.msra.mxu0 0.0
        %579 = vmatpush.xpose.msra.mxu0 0.0
        %580 = vmatpush.xpose.msra.mxu0 %v564
        %581 = vmatpush.xpose.msra.mxu0 %v561
        %582 = vmatmul.f32.gmra.mxu0 %v558
        %v583 = vpop.f32.mrf.mxu0
        %v584 = vadd.f32 0.0, %v583
        %585 = vdwg.mxu0
        %v587 = vsel %vm336, %v556, 0
        %v590 = vsel %vm336, %v358, 0
        %v593 = vsel %vm336, %v360, 0
        %595 = vmatpush.xpose.msra.mxu0 0.0
        %596 = vmatpush.xpose.msra.mxu0 0.0
        %597 = vmatpush.xpose.msra.mxu0 0.0
        %598 = vmatpush.xpose.msra.mxu0 0.0
        %599 = vmatpush.xpose.msra.mxu0 0.0
        %600 = vmatpush.xpose.msra.mxu0 0.0
        %601 = vmatpush.xpose.msra.mxu0 0.0
        %602 = vmatpush.xpose.msra.mxu0 0.0
        %603 = vmatpush.xpose.msra.mxu0 0.0
        %604 = vmatpush.xpose.msra.mxu0 0.0
        %605 = vmatpush.xpose.msra.mxu0 0.0
        %606 = vmatpush.xpose.msra.mxu0 0.0
        %607 = vmatpush.xpose.msra.mxu0 0.0
        %608 = vmatpush.xpose.msra.mxu0 0.0
        %609 = vmatpush.xpose.msra.mxu0 %v593
        %610 = vmatpush.xpose.msra.mxu0 %v590
        %611 = vmatmul.f32.gmra.mxu0 %v587
        %v612 = vpop.f32.mrf.mxu0
        %v613 = vadd.f32 0.0, %v612
        %614 = vdwg.mxu0
        %v615 = vmul.f32 %v584, %v454
        %v616 = vmul.f32 %v613, %v460
        %v617 = vadd.f32 %v209, %v553
        %v618 = vadd.f32 %v210, %v554
        %619 = vst.msk [vmem:[%s205] sm:$0xff] %vm336, %v617
        %620 = vst.msk [vmem:[%s205 + $0x10] sm:$0xff] %vm336, %v618
        %v621 = vadd.f32 %v211, %v615
        %v622 = vadd.f32 %v212, %v616
        %623 = vst.msk [vmem:[%s205 + $0x8] sm:$0xff] %vm336, %v621
        %624 = vst.msk [vmem:[%s205 + $0x18] sm:$0xff] %vm336, %v622
        %s625 = sand.u32 %s82, 1
        %s626 = scalar_lea.sflag [#allocation4], %s625
        %s627 = sand.u32 %s82, 1
        %s628 = smul.addr %s627, 32
        %s629 = scalar_lea.vmem [#allocation7], %s628
        // Predicated region
        $region37: #{tpu_custom_call.1} parent=27 // pred_check
          %p630 = pneg %p92
        $region38: #{tpu_custom_call.1} parent=27 // pred_check_branch
          %632 = sbr.rel (%p630) target = $region40
        $region39: #{tpu_custom_call.1} parent=27 // pred_region
          %s633 = smul.u32 2, %s22
          %635 = vsyncadd %s626, 0
          %s636 = smul.addr %s633, 2
          %s637 = smul.addr %s636, 8
          %s638 = scalar_lea.hbm %s2, %s637
          %s639 = sshll.u32 %s629, 4
          %s640 = int_to_ptr.vmem [resolvable:$true] %s639
          %s641 = sshll.u32 %s638, 4
          %s642 = int_to_ptr.hbm [resolvable:$true] %s641
          %647 = dma.vmem_to_hbm [thread:$0]  %s640, 512, %s642, %s626, 128, 128, 8
        $region40: #{tpu_custom_call.1} parent=27 // pred_fallthru
          _
      $region28: #{tpu_custom_call.1} parent=5 // pred_fallthru
        _
      %p648 = scmp.le.s32.totalorder 2, %s17
      // Predicated region
      $region41: #{tpu_custom_call.1} parent=5 // pred_check
        %p649 = pneg %p648
      $region42: #{tpu_custom_call.1} parent=5 // pred_check_branch
        %651 = sbr.rel (%p649) target = $region44
      $region43: #{tpu_custom_call.1} parent=5 // pred_region
        %s652 = ssub.s32 %s17, 2
        // Predicated region
        $region45: #{tpu_custom_call.1} parent=43 // pred_check
          %p653 = pneg %p98
        $region46: #{tpu_custom_call.1} parent=43 // pred_check_branch
          %655 = sbr.rel (%p653) target = $region48
        $region47: #{tpu_custom_call.1} parent=43 // pred_region
          %s656 = sand.u32 %s83, 1
          %s657 = scalar_lea.sflag [#allocation4], %s656
          %s658 = sand.u32 %s83, 1
          %s659 = smul.addr %s658, 32
          %s660 = scalar_lea.vmem [#allocation7], %s659
          %662 = dma.done %s657, 512
        $region48: #{tpu_custom_call.1} parent=43 // pred_fallthru
          _
      $region44: #{tpu_custom_call.1} parent=5 // pred_fallthru
        _
    $region6: #{tpu_custom_call.1} parent=1 // loop_footer
      %s21 = sadd.s32 1, %s17
    $region7: #{tpu_custom_call.1} parent=1 // loop_footer_branch
      %16 = sbr.rel target = $region3
    $region8: #{tpu_custom_call.1} parent=1 // loop_exit
      _
    %663 = vsyncpa [#allocation3], 1
    %s664 = scalar_lea.sflag [#allocation3], 1
    %665 = vsyncpa %s664, 1
    %666 = vsyncpa [#allocation6], 1
    %s667 = scalar_lea.sflag [#allocation6], 1
    %668 = vsyncpa %s667, 1
    %669 = vsyncpa [#allocation4], 1
    %s670 = scalar_lea.sflag [#allocation4], 1
    %671 = vsyncpa %s670, 1

</llo_original>
